<compile_context>
chip_gen: v7x
topology: tpu7x:2x2x1
jax: 0.10.0
libtpu: 0.0.40
codegen_flags: <defaults>
</compile_context>

<pallas_src>
import jax
import jax.numpy as jnp
from jax.experimental import pallas as pl
from jax.experimental.pallas import tpu as pltpu

_NEG_BIG = -1e30  # f32-safe "masked logit" for padded vocab columns


def _round_up(x, m):
    return ((x + m - 1) // m) * m


def _cdiv(a, b):
    return (a + b - 1) // b


def _make_kernel(bias_resident):
    def kernel(x_ref, w_ref, b_ref, o_ref, m_ref, l_ref):
        # x_ref: (tm, D) bf16, w_ref: (D, tv) bf16,
        # b_ref: (1, Vp) f32 resident OR (1, tv) f32 streamed,
        # o_ref: (tm, tv) out tile, m_ref/l_ref: (tm, 1) f32 scratch.
        p = pl.program_id(1)   # 0: accumulate logsumexp, 1: write normalized logits
        j = pl.program_id(2)   # vocab tile
        tv = w_ref.shape[1]

        @pl.when(jnp.logical_and(p == 0, j == 0))
        def _():
            m_ref[...] = jnp.full_like(m_ref, -jnp.inf)
            l_ref[...] = jnp.zeros_like(l_ref)

        if bias_resident:
            start = pl.multiple_of(j * tv, 128)
            bias = b_ref[:, pl.ds(start, tv)]
        else:
            bias = b_ref[...]

        # MXU matmul (bf16 inputs, f32 accumulation); softmax math stays in f32.
        logits = jnp.dot(x_ref[...], w_ref[...],
                         preferred_element_type=jnp.float32) + bias

        @pl.when(p == 0)
        def _():
            m_prev = m_ref[...]
            m_new = jnp.maximum(m_prev, jnp.max(logits, axis=-1, keepdims=True))
            l_ref[...] = (l_ref[...] * jnp.exp(m_prev - m_new)
                          + jnp.sum(jnp.exp(logits - m_new), axis=-1,
                                    keepdims=True))
            m_ref[...] = m_new

        @pl.when(p == 1)
        def _():
            lse = m_ref[...] + jnp.log(l_ref[...])
            o_ref[...] = (logits - lse).astype(o_ref.dtype)

    return kernel


def generator_forward(x, w, b, *, tm=512, tv=2048, out_dtype=None,
                      use_bf16_matmul=True):
    """log_softmax(x @ w + b, axis=-1)  ==  Generator(d_model, vocab).forward.

    x: [B, S, D]; w: [D, V] (transposed vs. nn.Linear's [V, D]); b: [V].
    Returns [B, S, V] in `out_dtype` (default x.dtype).
    """
    B, S, D = x.shape
    V = w.shape[1]
    M = B * S
    out_dtype = out_dtype if out_dtype is not None else x.dtype
    # TODO(synk): downstream callers can pass out_dtype=jnp.bfloat16 to halve the
    # M*V HBM writeback; an int8 (v6e) / fp8 (v7x) weight stream is a further
    # 2x on the dominant D*V read but is not drop-in, so it is not enabled here.

    in_dtype = jnp.bfloat16 if use_bf16_matmul else x.dtype
    in_bytes = jnp.dtype(in_dtype).itemsize
    out_bytes = jnp.dtype(out_dtype).itemsize

    # --- chip VMEM budget ----------------------------------------------------
    try:
        chip_vmem = int(getattr(pltpu.get_tpu_info(), "vmem_capacity_bytes",
                                64 * 2**20))
    except Exception:
        chip_vmem = 64 * 2**20            # conservative default (v7x)
    budget = (chip_vmem * 3) // 4         # headroom for Mosaic internals

    # --- tile sizing -----------------------------------------------------------
    # Row tile: big (the streamed D*V weight traffic scales as 1/tm), 8-aligned,
    # clamped for tiny M.
    tm = max(8, _round_up(min(tm, _round_up(M, 8)), 8))

    # Vocab tile: lane-dense; 256-aligned (v6e/v7x MXU native) when streaming,
    # or the whole (128-aligned) vocab if it already fits in one tile.
    v_full = _round_up(V, 128)
    if v_full <= tv:
        tv = v_full
    else:
        tv = max(256, (tv // 256) * 256)

    def _need(tm_, tv_):
        # Double-buffered input/output tiles + streamed bias tile + scratch.
        return (2 * tm_ * D * in_bytes          # x tile
                + 2 * D * tv_ * in_bytes        # weight tile
                + 2 * 8 * tv_ * 4               # bias tile (8-sublane padded)
                + 2 * tm_ * tv_ * out_bytes     # output tile
                + 4 * tm_ * 4)                  # m / l scratch

    while _need(tm, tv) > budget:
        if tv > 512:
            tv = max(512, _round_up(tv // 2, 256))
        elif tm > 128:
            tm = max(128, _round_up(tm // 2, 8))
        else:
            break   # smallest sane tiles; nothing more to shrink

    # v7x megacore: make sure the "parallel" row axis has >= 2 blocks so both
    # TensorCores get work (harmless elsewhere).
    if M >= 16 and _cdiv(M, tm) < 2:
        tm = max(8, _round_up(_cdiv(M, 2), 8))

    Mp = _round_up(M, tm)
    Vp = _round_up(V, tv)

    # Bias: fully resident in VMEM when small (removes a per-step DMA),
    # otherwise streamed (1, tv) tiles. 64 B/column = 2 buffers * 8 sublanes * 4 B.
    bias_resident = 64 * Vp <= min(4 * 2**20, budget // 8)

    vmem_need = _need(tm, tv) + (64 * Vp if bias_resident else 0)
    vmem_limit = int(min(chip_vmem, max(vmem_need + (8 << 20), 32 << 20)))

    # --- operand prep ----------------------------------------------------------
    x2d = x.reshape(M, D).astype(in_dtype)
    w_c = w.astype(in_dtype)
    b2d = b.reshape(1, V).astype(jnp.float32)
    if Mp != M:
        x2d = jnp.pad(x2d, ((0, Mp - M), (0, 0)))          # extra rows sliced away
    if Vp != V:
        w_c = jnp.pad(w_c, ((0, 0), (0, Vp - V)))
        # Huge-negative bias => padded columns underflow to 0 in the logsumexp.
        b2d = jnp.pad(b2d, ((0, 0), (0, Vp - V)), constant_values=_NEG_BIG)

    grid = (Mp // tm, 2, Vp // tv)

    if bias_resident:
        b_spec = pl.BlockSpec((1, Vp), lambda i, p, j: (0, 0))
    else:
        b_spec = pl.BlockSpec((1, tv), lambda i, p, j: (0, j))

    out2d = pl.pallas_call(
        _make_kernel(bias_resident),
        out_shape=jax.ShapeDtypeStruct((Mp, Vp), out_dtype),
        grid_spec=pltpu.PrefetchScalarGridSpec(
            num_scalar_prefetch=0,
            grid=grid,
            in_specs=[
                # x row tile: fetched once per row tile (index constant in p, j).
                pl.BlockSpec((tm, D), lambda i, p, j: (i, 0)),
                # Streamed weight tile (re-streamed on pass 1).
                pl.BlockSpec((D, tv), lambda i, p, j: (0, j)),
                b_spec,
            ],
            # (i, p*j): pinned at (i, 0) during pass 0 (no writebacks), swept
            # across vocab tiles during pass 1 (each block written exactly once).
            out_specs=pl.BlockSpec((tm, tv), lambda i, p, j: (i, p * j)),
            scratch_shapes=[
                pltpu.VMEM((tm, 1), jnp.float32),   # running max
                pltpu.VMEM((tm, 1), jnp.float32),   # running sum-exp
            ],
        ),
        compiler_params=pltpu.CompilerParams(
            dimension_semantics=("parallel", "arbitrary", "arbitrary"),
            vmem_limit_bytes=vmem_limit,
        ),
    )(x2d, w_c, b2d)

    return out2d[:M, :V].reshape(B, S, V)


if __name__ == "__main__":
    # Small, deterministic shapes consistent with Generator(d_model, vocab).
    # seq=9 exercises row padding + the >=2 row-block (megacore) clamp;
    # vocab=384 with tv=256 exercises vocab padding, the masked-column bias,
    # streamed weights, and the two-pass online-logsumexp over 2 vocab tiles.
    batch, seq, d_model, vocab = 2, 9, 32, 384

    key = jax.random.PRNGKey(0)
    kx, kw, kb = jax.random.split(key, 3)

    x = jax.random.normal(kx, (batch, seq, d_model), dtype=jnp.float32)
    # nn.Linear(d_model, vocab): weight [vocab, d_model], bias [vocab].
    # We keep the kernel-friendly transposed layout [d_model, vocab].
    w = (jax.random.normal(kw, (d_model, vocab), dtype=jnp.float32)
         * (1.0 / jnp.sqrt(d_model)))
    b = jax.random.normal(kb, (vocab,), dtype=jnp.float32) * 0.01

    out = generator_forward(x, w, b, tv=256)
    out = jax.block_until_ready(out)

    # Reference: same bf16 MXU feed, f32 accumulation, f32 softmax.
    logits_ref = jnp.einsum(
        "bsd,dv->bsv", x.astype(jnp.bfloat16), w.astype(jnp.bfloat16),
        preferred_element_type=jnp.float32) + b
    ref = jax.nn.log_softmax(logits_ref, axis=-1)

    assert out.shape == (batch, seq, vocab)
    assert jnp.allclose(out, ref, atol=2e-3, rtol=2e-3), "mismatch vs reference"

    print("KERNEL_OK")
</pallas_src>

<mosaic_0001>
module attributes {stable_mosaic.version = 11 : i64} {
  func.func @kernel(%arg0: i32, %arg1: i32, %arg2: i32, %arg3: memref<16x32xbf16, #tpu.memory_space<vmem>>, %arg4: memref<32x256xbf16, #tpu.memory_space<vmem>>, %arg5: memref<1x512xf32, #tpu.memory_space<vmem>>, %arg6: memref<16x256xf32, #tpu.memory_space<vmem>>, %arg7: memref<16x1xf32, #tpu.memory_space<vmem>>, %arg8: memref<16x1xf32, #tpu.memory_space<vmem>>) attributes {dimension_semantics = [#tpu.dimension_semantics<parallel>, #tpu.dimension_semantics<arbitrary>, #tpu.dimension_semantics<arbitrary>], iteration_bounds = array<i64: 2, 2, 2>, scalar_prefetch = 0 : i64, scratch_operands = 2 : i64, tpu.core_type = #tpu.core_type<tc>, window_params = [{transform_indices = @transform_0, window_bounds = array<i64: 16, 32>}, {transform_indices = @transform_1, window_bounds = array<i64: 32, 256>}, {pipeline_mode = #tpu.pipeline_mode<synchronous>, transform_indices = @transform_2, window_bounds = array<i64: 1, 512>}, {transform_indices = @transform_3, window_bounds = array<i64: 16, 256>}]} {
    %c0_i32 = arith.constant 0 : i32
    %0 = arith.cmpi eq, %arg1, %c0_i32 : i32
    %c0_i32_0 = arith.constant 0 : i32
    %1 = arith.cmpi eq, %arg2, %c0_i32_0 : i32
    %2 = arith.andi %0, %1 : i1
    %3 = arith.extui %2 : i1 to i32
    %c0_i32_1 = arith.constant 0 : i32
    %4 = arith.cmpi ne, %3, %c0_i32_1 : i32
    scf.if %4 {
      %cst_9 = arith.constant 0xFF800000 : f32
      %20 = vector.broadcast %cst_9 : f32 to vector<16x1xf32>
      %c0_10 = arith.constant 0 : index
      %c0_11 = arith.constant 0 : index
      %21 = vector.load %arg7[%c0_10, %c0_11] : memref<16x1xf32, #tpu.memory_space<vmem>>, vector<16x1xf32>
      tpu.vector_store %arg7[%c0_10, %c0_11], %20 {strides = array<i32>} : memref<16x1xf32, #tpu.memory_space<vmem>>, vector<16x1xf32>,
      %cst_12 = arith.constant 0.000000e+00 : f32
      %22 = vector.broadcast %cst_12 : f32 to vector<16x1xf32>
      %c0_13 = arith.constant 0 : index
      %c0_14 = arith.constant 0 : index
      %23 = vector.load %arg8[%c0_13, %c0_14] : memref<16x1xf32, #tpu.memory_space<vmem>>, vector<16x1xf32>
      tpu.vector_store %arg8[%c0_13, %c0_14], %22 {strides = array<i32>} : memref<16x1xf32, #tpu.memory_space<vmem>>, vector<16x1xf32>,
    } else {
    }
    %c256_i32 = arith.constant 256 : i32
    %5 = arith.muli %arg2, %c256_i32 : i32
    %6 = tpu.assume_multiple %5, 128 : i32
    %c0 = arith.constant 0 : index
    %7 = arith.index_cast %6 : i32 to index
    %8 = vector.load %arg5[%c0, %7] : memref<1x512xf32, #tpu.memory_space<vmem>>, vector<1x256xf32>
    %c0_2 = arith.constant 0 : index
    %c0_3 = arith.constant 0 : index
    %9 = vector.load %arg3[%c0_2, %c0_3] : memref<16x32xbf16, #tpu.memory_space<vmem>>, vector<16x32xbf16>
    %c0_4 = arith.constant 0 : index
    %c0_5 = arith.constant 0 : index
    %10 = vector.load %arg4[%c0_4, %c0_5] : memref<32x256xbf16, #tpu.memory_space<vmem>>, vector<32x256xbf16>
    %cst = arith.constant dense<0.000000e+00> : vector<16x256xf32>
    %11 = tpu.matmul %9, %10, %cst {dimension_numbers = #tpu.dot_dimension_numbers<[1], [0], [0], [1], [0, 0, 1, 1], [], []>} : vector<16x32xbf16>, vector<32x256xbf16>, vector<16x256xf32> -> vector<16x256xf32>
    %12 = vector.broadcast %8 : vector<1x256xf32> to vector<16x256xf32>
    %13 = arith.addf %11, %12 : vector<16x256xf32>
    %c0_i32_6 = arith.constant 0 : i32
    %14 = arith.cmpi eq, %arg1, %c0_i32_6 : i32
    %15 = arith.extui %14 : i1 to i32
    %c0_i32_7 = arith.constant 0 : i32
    %16 = arith.cmpi ne, %15, %c0_i32_7 : i32
    scf.if %16 {
      %c0_9 = arith.constant 0 : index
      %c0_10 = arith.constant 0 : index
      %20 = vector.load %arg7[%c0_9, %c0_10] : memref<16x1xf32, #tpu.memory_space<vmem>>, vector<16x1xf32>
      %cst_11 = arith.constant dense<0xFF800000> : vector<16xf32>
      %21 = vector.multi_reduction <maximumf>, %13, %cst_11 [1] : vector<16x256xf32> to vector<16xf32>
      %22 = vector.shape_cast %21 : vector<16xf32> to vector<16x1xf32>
      %23 = arith.maximumf %20, %22 : vector<16x1xf32>
      %c0_12 = arith.constant 0 : index
      %c0_13 = arith.constant 0 : index
      %24 = vector.load %arg8[%c0_12, %c0_13] : memref<16x1xf32, #tpu.memory_space<vmem>>, vector<16x1xf32>
      %25 = arith.subf %20, %23 : vector<16x1xf32>
      %26 = math.exp %25 : vector<16x1xf32>
      %27 = arith.mulf %24, %26 : vector<16x1xf32>
      %28 = vector.broadcast %23 : vector<16x1xf32> to vector<16x256xf32>
      %29 = arith.subf %13, %28 : vector<16x256xf32>
      %30 = math.exp %29 : vector<16x256xf32>
      %cst_14 = arith.constant dense<0.000000e+00> : vector<16xf32>
      %31 = vector.multi_reduction <add>, %30, %cst_14 [1] : vector<16x256xf32> to vector<16xf32>
      %32 = vector.shape_cast %31 : vector<16xf32> to vector<16x1xf32>
      %33 = arith.addf %27, %32 : vector<16x1xf32>
      %c0_15 = arith.constant 0 : index
      %c0_16 = arith.constant 0 : index
      %34 = vector.load %arg8[%c0_15, %c0_16] : memref<16x1xf32, #tpu.memory_space<vmem>>, vector<16x1xf32>
      tpu.vector_store %arg8[%c0_15, %c0_16], %33 {strides = array<i32>} : memref<16x1xf32, #tpu.memory_space<vmem>>, vector<16x1xf32>,
      %c0_17 = arith.constant 0 : index
      %c0_18 = arith.constant 0 : index
      %35 = vector.load %arg7[%c0_17, %c0_18] : memref<16x1xf32, #tpu.memory_space<vmem>>, vector<16x1xf32>
      tpu.vector_store %arg7[%c0_17, %c0_18], %23 {strides = array<i32>} : memref<16x1xf32, #tpu.memory_space<vmem>>, vector<16x1xf32>,
    } else {
    }
    %c1_i32 = arith.constant 1 : i32
    %17 = arith.cmpi eq, %arg1, %c1_i32 : i32
    %18 = arith.extui %17 : i1 to i32
    %c0_i32_8 = arith.constant 0 : i32
    %19 = arith.cmpi ne, %18, %c0_i32_8 : i32
    scf.if %19 {
      %c0_9 = arith.constant 0 : index
      %c0_10 = arith.constant 0 : index
      %20 = vector.load %arg7[%c0_9, %c0_10] : memref<16x1xf32, #tpu.memory_space<vmem>>, vector<16x1xf32>
      %c0_11 = arith.constant 0 : index
      %c0_12 = arith.constant 0 : index
      %21 = vector.load %arg8[%c0_11, %c0_12] : memref<16x1xf32, #tpu.memory_space<vmem>>, vector<16x1xf32>
      %22 = math.log %21 : vector<16x1xf32>
      %23 = arith.addf %20, %22 : vector<16x1xf32>
      %24 = vector.broadcast %23 : vector<16x1xf32> to vector<16x256xf32>
      %25 = arith.subf %13, %24 : vector<16x256xf32>
      %c0_13 = arith.constant 0 : index
      %c0_14 = arith.constant 0 : index
      %26 = vector.load %arg6[%c0_13, %c0_14] : memref<16x256xf32, #tpu.memory_space<vmem>>, vector<16x256xf32>
      tpu.vector_store %arg6[%c0_13, %c0_14], %25 {strides = array<i32>} : memref<16x256xf32, #tpu.memory_space<vmem>>, vector<16x256xf32>,
    } else {
    }
    return
  }
  func.func @transform_0(%arg0: i32, %arg1: i32, %arg2: i32) -> (i32, i32) {
    %c0_i32 = arith.constant 0 : i32
    %c0_i32_0 = arith.constant 0 : i32
    return %arg0, %c0_i32 : i32, i32
  }
  func.func @transform_1(%arg0: i32, %arg1: i32, %arg2: i32) -> (i32, i32) {
    %c0_i32 = arith.constant 0 : i32
    %c0_i32_0 = arith.constant 0 : i32
    return %c0_i32, %arg2 : i32, i32
  }
  func.func @transform_2(%arg0: i32, %arg1: i32, %arg2: i32) -> (i32, i32) {
    %c0_i32 = arith.constant 0 : i32
    %c0_i32_0 = arith.constant 0 : i32
    %c0_i32_1 = arith.constant 0 : i32
    return %c0_i32, %c0_i32_0 : i32, i32
  }
  func.func @transform_3(%arg0: i32, %arg1: i32, %arg2: i32) -> (i32, i32) {
    %0 = arith.muli %arg1, %arg2 : i32
    %c0_i32 = arith.constant 0 : i32
    return %arg0, %0 : i32, i32
  }
}

</mosaic_0001>

<llo_original>
// kernel: tpu_custom_call.1
$region0: #{tpu_custom_call.1}
  #allocation0 [shape = 'u32[]', space=smem, size = 0x4, offset = 0x4, fixed_abs, tag = 'smem constant byte address 0x4 - core index']
  #allocation1 [shape = 'u32[144,128]{1,0:T(1,128)}', space=vmem, size = 0x12000, scoped, tag = 'internal scratch']
  #allocation2 [shape = 'f32[16,1]{1,0:T(8,128)}', space=vmem, size = 0x2000, scoped, tag = 'scratch operand']
  #allocation3 [shape = 'f32[16,1]{1,0:T(8,128)}', space=vmem, size = 0x2000, scoped, tag = 'scratch operand']
  %s0 = inlined_call_operand.hbm [shape: bf16[32,32], index: 0, kind: input, shape index: {}]
  %s1 = inlined_call_operand.hbm [shape: bf16[32,512], index: 1, kind: input, shape index: {}]
  %s2 = inlined_call_operand.vmem [shape: f32[1,512], index: 2, kind: input, shape index: {}]
  %s3 = inlined_call_operand.hbm [shape: f32[32,512], index: 3, kind: output, shape index: {}]
  %s4 = sld [smem:[#allocation0]]
  $region65: #{tpu_custom_call.1} parent=0
    _
  %s6 = ssub.s32 1, %s4
  %s7 = scalar_select 0, %s6, %s4
  $region1: #{tpu_custom_call.1} parent=0
    #allocation4 [shape = 'u8[8192]{0}', space=vmem, size = 0x2000, scoped, tag = 'input window, operand 0']
    #allocation5 [shape = 's32[2]{0}', space=sflag, size = 0x8, scoped, tag = 'scoped memory for tpu_custom_call.1']
    #allocation6 [shape = 's32[2]{0}', space=sflag, size = 0x8, scoped, tag = 'scoped memory for tpu_custom_call.1']
    #allocation7 [shape = 'u8[32768]{0}', space=vmem, size = 0x8000, scoped, tag = 'input window, operand 1']
    #allocation8 [shape = 's32[2]{0}', space=sflag, size = 0x8, scoped, tag = 'scoped memory for tpu_custom_call.1']
    #allocation9 [shape = 'u8[32768]{0}', space=vmem, size = 0x8000, scoped, tag = 'output window, operand 0']
    %8 = vsyncpa [#allocation5], 0
    %s9 = scalar_lea.sflag [#allocation5], 1
    %10 = vsyncpa %s9, 0
    %11 = vsyncpa [#allocation8], 0
    %s12 = scalar_lea.sflag [#allocation8], 1
    %13 = vsyncpa %s12, 0
    %14 = vsyncpa [#allocation6], 0
    %s15 = scalar_lea.sflag [#allocation6], 1
    %16 = vsyncpa %s15, 0
    loop: start=0, step=1, limit=10
    $region2: #{tpu_custom_call.1} parent=1 // loop_pre_header
      _
    $region3: #{tpu_custom_call.1} parent=1 // loop_header
      %s18 = sphi 0, %s22
      %p19 = scmp.ge.s32.totalorder %s18, 10
      %s25 = sphi 0, %s44
      %s26 = sphi 0, %s40
      %s27 = sphi 0, %s36
      %s28 = sphi 0, %s25
      %s29 = sphi 0, %s26
      %s30 = sphi 0, %s27
      %s31 = sphi 0, %s28
      %s32 = sphi 0, %s29
      %s33 = sphi 0, %s30
      %s47 = sphi 0, %s49
      %s50 = sphi 0, %s47
      %s51 = sphi 0, %s50
      %s67 = sphi 0, %s51
      %s73 = sphi 0, %s75
      %s76 = sphi 0, %s73
      %s77 = sphi 0, %s76
      %s93 = sphi 0, %s77
      %s97 = sphi 0, %s97
      %s99 = sphi 0, %s97
      %s100 = sphi 0, %s99
      %s114 = sphi 0, %s100
      %s124 = sphi 0, %s126
      %s127 = sphi 0, %s124
      %s128 = sphi 0, %s127
      %s144 = sphi 0, %s128
    $region4: #{tpu_custom_call.1} parent=1 // loop_header_branch
      %21 = sbr.rel (%p19) target = $region8
    $region5: #{tpu_custom_call.1} parent=1 // loop_body
      %s23 = ssub.s32 %s18, 1
      %s24 = ssub.s32 %s18, 2
      %s34 = sadd.s32 1, %s27
      %p35 = scmp.ge.s32.totalorder %s34, 2
      %s36 = scalar_select %p35, 0, %s34
      %s37 = sadd.s32 1, %s26
      %s38 = scalar_select %p35, %s37, %s26
      %p39 = scmp.ge.s32.totalorder %s38, 2
      %s40 = scalar_select %p39, 0, %s38
      %s41 = sadd.s32 1, %s25
      %s42 = scalar_select %p39, %s41, %s25
      %p43 = scmp.ge.s32.totalorder %s42, 2
      %s44 = scalar_select %p43, 0, %s42
      %s45 = ssub.s32 %s25, %s44
      %p46 = scmp.eq.s32.totalorder %s45, 0
      %s48 = sadd.s32 %s47, 1
      %s49 = scalar_select %p46, %s47, %s48
      %p52 = pneg %p46
      %p53 = scmp.eq.s32.totalorder %s18, 7
      %p54 = por %p52, %p53
      %p55 = scmp.ne.s32.totalorder %s47, %s50
      %p56 = scmp.eq.s32.totalorder %s18, 0
      %p57 = por %p55, %p56
      %p58 = scmp.ne.s32.totalorder %s47, %s50
      %p59 = scmp.eq.s32.totalorder %s23, 7
      %p60 = por %p58, %p59
      %p61 = scmp.ne.s32.totalorder %s50, %s51
      %p62 = scmp.eq.s32.totalorder %s23, 0
      %p63 = por %p61, %p62
      %p64 = scmp.ne.s32.totalorder %s50, %s51
      %p65 = scmp.eq.s32.totalorder %s24, 7
      %p66 = por %p64, %p65
      %p68 = scmp.ne.s32.totalorder %s51, %s67
      %p69 = scmp.eq.s32.totalorder %s24, 0
      %p70 = por %p68, %p69
      %s71 = ssub.s32 %s27, %s36
      %p72 = scmp.eq.s32.totalorder %s71, 0
      %s74 = sadd.s32 %s73, 1
      %s75 = scalar_select %p72, %s73, %s74
      %p78 = pneg %p72
      %p79 = scmp.eq.s32.totalorder %s18, 7
      %p80 = por %p78, %p79
      %p81 = scmp.ne.s32.totalorder %s73, %s76
      %p82 = scmp.eq.s32.totalorder %s18, 0
      %p83 = por %p81, %p82
      %p84 = scmp.ne.s32.totalorder %s73, %s76
      %p85 = scmp.eq.s32.totalorder %s23, 7
      %p86 = por %p84, %p85
      %p87 = scmp.ne.s32.totalorder %s76, %s77
      %p88 = scmp.eq.s32.totalorder %s23, 0
      %p89 = por %p87, %p88
      %p90 = scmp.ne.s32.totalorder %s76, %s77
      %p91 = scmp.eq.s32.totalorder %s24, 7
      %p92 = por %p90, %p91
      %p94 = scmp.ne.s32.totalorder %s77, %s93
      %p95 = scmp.eq.s32.totalorder %s24, 0
      %p96 = por %p94, %p95
      %s98 = sadd.s32 %s97, 1
      %p101 = scmp.eq.s32.totalorder %s18, 7
      %p102 = scmp.ne.s32.totalorder %s97, %s99
      %p103 = scmp.eq.s32.totalorder %s18, 0
      %p104 = por %p102, %p103
      %p105 = scmp.ne.s32.totalorder %s97, %s99
      %p106 = scmp.eq.s32.totalorder %s23, 7
      %p107 = por %p105, %p106
      %p108 = scmp.ne.s32.totalorder %s99, %s100
      %p109 = scmp.eq.s32.totalorder %s23, 0
      %p110 = por %p108, %p109
      %p111 = scmp.ne.s32.totalorder %s99, %s100
      %p112 = scmp.eq.s32.totalorder %s24, 7
      %p113 = por %p111, %p112
      %p115 = scmp.ne.s32.totalorder %s100, %s114
      %p116 = scmp.eq.s32.totalorder %s24, 0
      %p117 = por %p115, %p116
      %s118 = smul.u32 %s26, %s27
      %s119 = smul.u32 %s40, %s36
      %s120 = ssub.s32 %s25, %s44
      %s121 = ssub.s32 %s118, %s119
      %s122 = sor.u32 %s120, %s121
      %p123 = scmp.eq.s32.totalorder %s122, 0
      %s125 = sadd.s32 %s124, 1
      %s126 = scalar_select %p123, %s124, %s125
      %p129 = pneg %p123
      %p130 = scmp.eq.s32.totalorder %s18, 7
      %p131 = por %p129, %p130
      %p132 = scmp.ne.s32.totalorder %s124, %s127
      %p133 = scmp.eq.s32.totalorder %s18, 0
      %p134 = por %p132, %p133
      %p135 = scmp.ne.s32.totalorder %s124, %s127
      %p136 = scmp.eq.s32.totalorder %s23, 7
      %p137 = por %p135, %p136
      %p138 = scmp.ne.s32.totalorder %s127, %s128
      %p139 = scmp.eq.s32.totalorder %s23, 0
      %p140 = por %p138, %p139
      %p141 = scmp.ne.s32.totalorder %s127, %s128
      %p142 = scmp.eq.s32.totalorder %s24, 7
      %p143 = por %p141, %p142
      %p145 = scmp.ne.s32.totalorder %s128, %s144
      %p146 = scmp.eq.s32.totalorder %s24, 0
      %p147 = por %p145, %p146
      %p148 = scmp.le.s32.totalorder 1, %s18
      %p149 = scmp.lt.s32.totalorder %s18, 9
      %p150 = pnand %p148, %p149
      %p151 = pneg %p150
      // Predicated region
      $region9: #{tpu_custom_call.1} parent=5 // pred_check
        _
      $region10: #{tpu_custom_call.1} parent=5 // pred_check_branch
        %153 = sbr.rel (%p150) target = $region12
      $region11: #{tpu_custom_call.1} parent=5 // pred_region
        %s154 = ssub.s32 %s18, 1
        // Predicated region
        $region13: #{tpu_custom_call.1} parent=11 // pred_check
          %p155 = pneg %p110
        $region14: #{tpu_custom_call.1} parent=11 // pred_check_branch
          %157 = sbr.rel (%p155) target = $region16
        $region15: #{tpu_custom_call.1} parent=11 // pred_region
          _
        $region16: #{tpu_custom_call.1} parent=11 // pred_fallthru
          _
      $region12: #{tpu_custom_call.1} parent=5 // pred_fallthru
        _
      %p158 = scmp.lt.s32.totalorder %s18, 8
      // Predicated region
      $region17: #{tpu_custom_call.1} parent=5 // pred_check
        %p159 = pneg %p158
      $region18: #{tpu_custom_call.1} parent=5 // pred_check_branch
        %161 = sbr.rel (%p159) target = $region20
      $region19: #{tpu_custom_call.1} parent=5 // pred_region
        // Predicated region
        $region21: #{tpu_custom_call.1} parent=19 // pred_check
          %p162 = pneg %p57
        $region22: #{tpu_custom_call.1} parent=19 // pred_check_branch
          %164 = sbr.rel (%p162) target = $region24
        $region23: #{tpu_custom_call.1} parent=19 // pred_region
          %s165 = sand.u32 %s47, 1
          %s166 = scalar_lea.sflag [#allocation5], %s165
          %s167 = sand.u32 %s47, 1
          %s168 = smul.addr %s167, 8
          %s169 = scalar_lea.vmem [#allocation4], %s168
          %s170 = smul.u32 2, %s25
          %s172 = ssub.s32 128, 128
          %173 = vsyncadd %s166, %s172
          %s174 = smul.addr %s170, 64
          %s175 = scalar_lea.hbm %s0, %s174
          %s176 = sshll.u32 %s169, 4
          %s177 = int_to_ptr.vmem [resolvable:$true] %s176
          %182 = dma.hbm_to_vmem [thread:$0]  %s175, 128, %s177, %s166, 64, 64, 4
        $region24: #{tpu_custom_call.1} parent=19 // pred_fallthru
          _
        // Predicated region
        $region25: #{tpu_custom_call.1} parent=19 // pred_check
          %p183 = pneg %p83
        $region26: #{tpu_custom_call.1} parent=19 // pred_check_branch
          %185 = sbr.rel (%p183) target = $region28
        $region27: #{tpu_custom_call.1} parent=19 // pred_region
          %s186 = sand.u32 %s73, 1
          %s187 = scalar_lea.sflag [#allocation8], %s186
          %s188 = sand.u32 %s73, 1
          %s189 = smul.addr %s188, 32
          %s190 = scalar_lea.vmem [#allocation7], %s189
          %s191 = smul.u32 2, %s27
          %s193 = ssub.s32 512, 512
          %194 = vsyncadd %s187, %s193
          %s195 = smul.addr %s191, 64
          %s196 = scalar_lea.hbm %s1, %s195
          %s197 = sshll.u32 %s190, 4
          %s198 = int_to_ptr.vmem [resolvable:$true] %s197
          %203 = dma.hbm_to_vmem [thread:$0]  %s196, 512, %s198, %s187, 256, 128, 8
        $region28: #{tpu_custom_call.1} parent=19 // pred_fallthru
          _
      $region20: #{tpu_custom_call.1} parent=5 // pred_fallthru
        _
      %p204 = scmp.le.s32.totalorder 1, %s18
      %p205 = scmp.lt.s32.totalorder %s18, 9
      %p206 = pnand %p204, %p205
      %p207 = pneg %p206
      // Predicated region
      $region29: #{tpu_custom_call.1} parent=5 // pred_check
        _
      $region30: #{tpu_custom_call.1} parent=5 // pred_check_branch
        %209 = sbr.rel (%p206) target = $region32
      $region31: #{tpu_custom_call.1} parent=5 // pred_region
        %s210 = ssub.s32 %s18, 1
        %s211 = sand.u32 %s50, 1
        %s212 = scalar_lea.sflag [#allocation5], %s211
        %s213 = sand.u32 %s50, 1
        %s214 = smul.addr %s213, 8
        %s215 = scalar_lea.vmem [#allocation4], %s214
        // Predicated region
        $region33: #{tpu_custom_call.1} parent=31 // pred_check
          %p216 = pneg %p63
        $region34: #{tpu_custom_call.1} parent=31 // pred_check_branch
          %218 = sbr.rel (%p216) target = $region36
        $region35: #{tpu_custom_call.1} parent=31 // pred_region
          %219 = dma.done %s212, 128
        $region36: #{tpu_custom_call.1} parent=31 // pred_fallthru
          _
        %s220 = sand.u32 %s76, 1
        %s221 = scalar_lea.sflag [#allocation8], %s220
        %s222 = sand.u32 %s76, 1
        %s223 = smul.addr %s222, 32
        %s224 = scalar_lea.vmem [#allocation7], %s223
        // Predicated region
        $region37: #{tpu_custom_call.1} parent=31 // pred_check
          %p225 = pneg %p89
        $region38: #{tpu_custom_call.1} parent=31 // pred_check_branch
          %227 = sbr.rel (%p225) target = $region40
        $region39: #{tpu_custom_call.1} parent=31 // pred_region
          %228 = dma.done %s221, 512
        $region40: #{tpu_custom_call.1} parent=31 // pred_fallthru
          _
        %s229 = sand.u32 %s50, 1
        %s230 = scalar_lea.sflag [#allocation5], %s229
        %s231 = sand.u32 %s50, 1
        %s232 = smul.addr %s231, 8
        %s233 = scalar_lea.vmem [#allocation4], %s232
        %p234 = pneg %p63
        %p235 = pneg %p60
        %s236 = sand.u32 %s76, 1
        %s237 = scalar_lea.sflag [#allocation8], %s236
        %s238 = sand.u32 %s76, 1
        %s239 = smul.addr %s238, 32
        %s240 = scalar_lea.vmem [#allocation7], %s239
        %p241 = pneg %p89
        %p242 = pneg %p86
        %p243 = pneg %p110
        %p244 = pneg %p107
        %p245 = pneg %p140
        %p246 = pneg %p137
        %s247 = sand.u32 %s127, 1
        %s248 = scalar_lea.sflag [#allocation6], %s247
        %s249 = sand.u32 %s127, 1
        %s250 = smul.addr %s249, 32
        %s251 = scalar_lea.vmem [#allocation9], %s250
        %s252 = smul.u32 2, %s28
        %s253 = smul.u32 2, %s30
        %s254 = smul.u32 %s29, %s30
        %s255 = smul.u32 2, %s28
        %s256 = smul.u32 2, %s254
        %p258 = scmp.eq.s32.totalorder %s29, 0
        %p259 = scmp.eq.s32.totalorder %s30, 0
        %p260 = pnand %p258, %p259
        %p261 = pneg %p260
        // Predicated region
        $region41: #{tpu_custom_call.1} parent=31 // pred_check
          _
        $region42: #{tpu_custom_call.1} parent=31 // pred_check_branch
          %263 = sbr.rel (%p260) target = $region44
        $region43: #{tpu_custom_call.1} parent=31 // pred_region
          %vm264 = vcmask 7168
          %265 = vst.msk [vmem:[#allocation2] sm:$0xff] %vm264, -inf
          %266 = vst.msk [vmem:[#allocation2 + $0x8] sm:$0xff] %vm264, -inf
          %267 = vst.msk [vmem:[#allocation3] sm:$0xff] %vm264, 0.0
          %268 = vst.msk [vmem:[#allocation3 + $0x8] sm:$0xff] %vm264, 0.0
        $region44: #{tpu_custom_call.1} parent=31 // pred_fallthru
          _
        %s269 = smul.u32 %s30, 256
        %s270 = sshra.s32 %s269, 7
        %s271 = sand.u32 %s269, 127
        %s272 = scalar_lea.vmem %s2, %s270
        %v273 = vld [vmem:[%s272] sm:$0x3]
        %v274 = vld [vmem:[%s215] sm:$0xf]
        %v275 = vld [vmem:[%s215 + $0x4] sm:$0xf]
        %v276 = vld [vmem:[%s224] sm:$0xff]
        %v277 = vld [vmem:[%s224 + $0x8] sm:$0xff]
        %v278 = vld [vmem:[%s224 + $0x10] sm:$0xff]
        %v279 = vld [vmem:[%s224 + $0x18] sm:$0xff]
        %v281 = vlaneseq
        %v282 = vshrl.u32 %v281, 7
        %v283 = vsub.s32 0, %v282
        %v284 = vrot.slane %v273, %v283
        %v285 = vlaneseq
        %v286 = vshrl.u32 %v285, 7
        %v287 = vsub.s32 1, %v286
        %v288 = vrot.slane %v273, %v287
        %v293 = vunpack.c.l.b16 %v274
        %v294 = vunpack.c.l.b16 %v275
        %v295 = vpack.c.b16 %v294, %v293
        %v300 = vunpack.c.l.b16 %v276
        %v301 = vunpack.c.h.b16 %v276
        %v302 = vunpack.c.l.b16 %v277
        %v303 = vunpack.c.h.b16 %v277
        %v304 = vunpack.c.l.b16 %v278
        %v305 = vunpack.c.h.b16 %v278
        %v306 = vunpack.c.l.b16 %v279
        %v307 = vunpack.c.h.b16 %v279
        %v308 = vpack.c.b16 %v302, %v300
        %v309 = vpack.c.b16 %v303, %v301
        %v310 = vpack.c.b16 %v306, %v304
        %v311 = vpack.c.b16 %v307, %v305
        %vm316 = vcmask 261120
        %v318 = vsel %vm316, %v295, 0
        %320 = vmatprep.subr.bf16.mxu0 %v309
        %321 = vmatpush1.bf16.msra.mxu0 %v308
        %322 = vmatprep.subr.bf16.mxu0 %v311
        %323 = vmatpush1.bf16.msra.mxu0 %v310
        %324 = vmatprep.subr.bf16.mxu0 0
        %325 = vmatpush1.bf16.msra.mxu0 0
        %326 = vmatprep.subr.bf16.mxu0 0
        %327 = vmatpush1.bf16.msra.mxu0 0
        %328 = vmatprep.subr.bf16.mxu0 0
        %329 = vmatpush1.bf16.msra.mxu0 0
        %330 = vmatprep.subr.bf16.mxu0 0
        %331 = vmatpush1.bf16.msra.mxu0 0
        %332 = vmatprep.subr.bf16.mxu0 0
        %333 = vmatpush1.bf16.msra.mxu0 0
        %334 = vmatprep.subr.bf16.mxu0 0
        %335 = vmatpush1.bf16.msra.mxu0 0
        %336 = vmatprep.subr.bf16.mxu0 0
        %337 = vmatpush1.bf16.msra.mxu0 0
        %338 = vmatprep.subr.bf16.mxu0 0
        %339 = vmatpush1.bf16.msra.mxu0 0
        %340 = vmatprep.subr.bf16.mxu0 0
        %341 = vmatpush1.bf16.msra.mxu0 0
        %342 = vmatprep.subr.bf16.mxu0 0
        %343 = vmatpush1.bf16.msra.mxu0 0
        %344 = vmatprep.subr.bf16.mxu0 0
        %345 = vmatpush1.bf16.msra.mxu0 0
        %346 = vmatprep.subr.bf16.mxu0 0
        %347 = vmatpush1.bf16.msra.mxu0 0
        %348 = vmatprep.subr.bf16.mxu0 0
        %349 = vmatpush1.bf16.msra.mxu0 0
        %350 = vmatprep.subr.bf16.mxu0 0
        %351 = vmatpush1.bf16.msra.mxu0 0
        %352 = vmatprep.mubr.bf16.mxu0 0
        %353 = vmatmul.mubr.bf16.gmra.mrb[0].mxu0 %v318
        %v354 = vpop.f32.mrb[0].mxu0
        %v355 = vadd.f32 %v284, %v354
        %v356 = vpop.f32.mrb[0].mxu0
        %v357 = vadd.f32 %v288, %v356
        %v358 = vpop.f32.mrb[0].mxu0
        %v359 = vadd.f32 %v284, %v358
        %v360 = vpop.f32.mrb[0].mxu0
        %v361 = vadd.f32 %v288, %v360
        %362 = vdwg.mxu0
        // Predicated region
        $region45: #{tpu_custom_call.1} parent=31 // pred_check
          %p363 = pneg %p258
        $region46: #{tpu_custom_call.1} parent=31 // pred_check_branch
          %365 = sbr.rel (%p363) target = $region48
        $region47: #{tpu_custom_call.1} parent=31 // pred_region
          %v366 = vld [vmem:[#allocation2] sm:$0xff]
          %v367 = vld [vmem:[#allocation2 + $0x8] sm:$0xff]
          %v368 = vmax.f32 %v355, %v357
          %369 = vmax.xlane.f32.xlu0 %v368
          %v370 = vpop.xlane.xlu0 %369
          %v371 = vmax.f32 %v359, %v361
          %372 = vmax.xlane.f32.xlu0 %v371
          %v373 = vpop.xlane.xlu0 %372
          %v374 = vmax.f32 %v366, %v370
          %v375 = vmax.f32 %v367, %v373
          %v376 = vld [vmem:[#allocation3] sm:$0xff]
          %v377 = vld [vmem:[#allocation3 + $0x8] sm:$0xff]
          %v378 = vsub.f32 %v366, %v374
          %v379 = vsub.f32 %v367, %v375
          %v380 = vmul.f32 %v378, 1.442695
          %v381 = vpow.pop %v380
          %v382 = vmul.f32 %v379, 1.442695
          %v383 = vpow.pop %v382
          %v384 = vmul.f32 %v376, %v381
          %v385 = vmul.f32 %v377, %v383
          %387 = vset.pattern.permute.xlu0 0
          %388 = vperm.xlu0 %387, %v374
          %v389 = vpop.permute.xlu0 %388
          %392 = vset.pattern.permute.xlu0 0
          %393 = vperm.xlu0 %392, %v375
          %v394 = vpop.permute.xlu0 %393
          %v396 = vsub.f32 %v355, %v389
          %v397 = vsub.f32 %v357, %v389
          %v398 = vsub.f32 %v359, %v394
          %v399 = vsub.f32 %v361, %v394
          %v400 = vmul.f32 %v396, 1.442695
          %v401 = vpow.pop %v400
          %v402 = vmul.f32 %v397, 1.442695
          %v403 = vpow.pop %v402
          %v404 = vmul.f32 %v398, 1.442695
          %v405 = vpow.pop %v404
          %v406 = vmul.f32 %v399, 1.442695
          %v407 = vpow.pop %v406
          %v408 = vadd.f32 %v401, %v403
          %409 = vadd.xlane.f32.xlu0 %v408
          %v410 = vpop.xlane.xlu0 %409
          %v411 = vadd.f32 %v405, %v407
          %412 = vadd.xlane.f32.xlu0 %v411
          %v413 = vpop.xlane.xlu0 %412
          %v414 = vadd.f32 %v384, %v410
          %v415 = vadd.f32 %v385, %v413
          %vm416 = vcmask 7168
          %417 = vst.msk [vmem:[#allocation3] sm:$0xff] %vm416, %v414
          %418 = vst.msk [vmem:[#allocation3 + $0x8] sm:$0xff] %vm416, %v415
          %419 = vst.msk [vmem:[#allocation2] sm:$0xff] %vm416, %v374
          %420 = vst.msk [vmem:[#allocation2 + $0x8] sm:$0xff] %vm416, %v375
        $region48: #{tpu_custom_call.1} parent=31 // pred_fallthru
          _
        %p421 = scmp.eq.s32.totalorder %s29, 1
        // Predicated region
        $region49: #{tpu_custom_call.1} parent=31 // pred_check
          %p422 = pneg %p421
        $region50: #{tpu_custom_call.1} parent=31 // pred_check_branch
          %424 = sbr.rel (%p422) target = $region52
        $region51: #{tpu_custom_call.1} parent=31 // pred_region
          %v425 = vld [vmem:[#allocation2] sm:$0xff]
          %v426 = vld [vmem:[#allocation2 + $0x8] sm:$0xff]
          %v427 = vld [vmem:[#allocation3] sm:$0xff]
          %v428 = vld [vmem:[#allocation3 + $0x8] sm:$0xff]
          %v429 = vlog2.pop %v427
          %v430 = vmul.f32 %v429, 0.6931472
          %v431 = vlog2.pop %v428
          %v432 = vmul.f32 %v431, 0.6931472
          %v433 = vadd.f32 %v425, %v430
          %v434 = vadd.f32 %v426, %v432
          %436 = vset.pattern.permute.xlu0 0
          %437 = vperm.xlu0 %436, %v433
          %v438 = vpop.permute.xlu0 %437
          %441 = vset.pattern.permute.xlu0 0
          %442 = vperm.xlu0 %441, %v434
          %v443 = vpop.permute.xlu0 %442
          %v445 = vsub.f32 %v355, %v438
          %v446 = vsub.f32 %v357, %v438
          %v447 = vsub.f32 %v359, %v443
          %v448 = vsub.f32 %v361, %v443
          %449 = vst [vmem:[%s251] sm:$0xff] %v445
          %450 = vst [vmem:[%s251 + $0x8] sm:$0xff] %v446
          %451 = vst [vmem:[%s251 + $0x10] sm:$0xff] %v447
          %452 = vst [vmem:[%s251 + $0x18] sm:$0xff] %v448
        $region52: #{tpu_custom_call.1} parent=31 // pred_fallthru
          _
        %s453 = sand.u32 %s127, 1
        %s454 = scalar_lea.sflag [#allocation6], %s453
        %s455 = sand.u32 %s127, 1
        %s456 = smul.addr %s455, 32
        %s457 = scalar_lea.vmem [#allocation9], %s456
        // Predicated region
        $region53: #{tpu_custom_call.1} parent=31 // pred_check
          %p458 = pneg %p137
        $region54: #{tpu_custom_call.1} parent=31 // pred_check_branch
          %460 = sbr.rel (%p458) target = $region56
        $region55: #{tpu_custom_call.1} parent=31 // pred_region
          %s461 = smul.u32 %s29, %s30
          %s462 = smul.u32 2, %s28
          %s463 = smul.u32 2, %s461
          %s465 = ssub.s32 512, 512
          %466 = vsyncadd %s454, %s465
          %s467 = smul.addr %s462, 4
          %s468 = sadd.s32 %s463, %s467
          %s469 = smul.addr %s468, 128
          %s470 = scalar_lea.hbm %s3, %s469
          %s471 = sshll.u32 %s457, 4
          %s472 = int_to_ptr.vmem [resolvable:$true] %s471
          %477 = dma.vmem_to_hbm [thread:$0]  %s472, 512, %s470, %s454, 256, 512, 16
        $region56: #{tpu_custom_call.1} parent=31 // pred_fallthru
          _
      $region32: #{tpu_custom_call.1} parent=5 // pred_fallthru
        _
      %p478 = scmp.le.s32.totalorder 2, %s18
      // Predicated region
      $region57: #{tpu_custom_call.1} parent=5 // pred_check
        %p479 = pneg %p478
      $region58: #{tpu_custom_call.1} parent=5 // pred_check_branch
        %481 = sbr.rel (%p479) target = $region60
      $region59: #{tpu_custom_call.1} parent=5 // pred_region
        %s482 = ssub.s32 %s18, 2
        // Predicated region
        $region61: #{tpu_custom_call.1} parent=59 // pred_check
          %p483 = pneg %p143
        $region62: #{tpu_custom_call.1} parent=59 // pred_check_branch
          %485 = sbr.rel (%p483) target = $region64
        $region63: #{tpu_custom_call.1} parent=59 // pred_region
          %s486 = sand.u32 %s128, 1
          %s487 = scalar_lea.sflag [#allocation6], %s486
          %s488 = sand.u32 %s128, 1
          %s489 = smul.addr %s488, 32
          %s490 = scalar_lea.vmem [#allocation9], %s489
          %491 = dma.done %s487, 512
        $region64: #{tpu_custom_call.1} parent=59 // pred_fallthru
          _
      $region60: #{tpu_custom_call.1} parent=5 // pred_fallthru
        _
    $region6: #{tpu_custom_call.1} parent=1 // loop_footer
      %s22 = sadd.s32 1, %s18
    $region7: #{tpu_custom_call.1} parent=1 // loop_footer_branch
      %17 = sbr.rel target = $region3
    $region8: #{tpu_custom_call.1} parent=1 // loop_exit
      _
    %492 = vsyncpa [#allocation5], 1
    %s493 = scalar_lea.sflag [#allocation5], 1
    %494 = vsyncpa %s493, 1
    %495 = vsyncpa [#allocation8], 1
    %s496 = scalar_lea.sflag [#allocation8], 1
    %497 = vsyncpa %s496, 1
    %498 = vsyncpa [#allocation6], 1
    %s499 = scalar_lea.sflag [#allocation6], 1
    %500 = vsyncpa %s499, 1

</llo_original>
